<compile_context>
chip_gen: v7x
topology: tpu7x:2x2x1
jax: 0.10.0
libtpu: 0.0.40
codegen_flags: <defaults>
</compile_context>

<pallas_src>
import jax
import jax.numpy as jnp
from jax.experimental import pallas as pl
from jax.experimental.pallas import tpu as pltpu

_LANE = 512                            # lane-dense slab width (multiple of 128)
_TARGET_TILE_BYTES = 2 * 1024 * 1024   # ~2 MiB per tile (safe w/ double-buffering)


def _loss1_kernel(pred_ref, out_ref):
    # Compute in f32 regardless of input dtype (precision insurance).
    p = pred_ref[...].astype(jnp.float32)
    q = 3.0 * p                       # shared subexpression
    t = q - 2.3
    u = 0.7 - q
    a = t * t * t + 1.0               # explicit cubes (no pow path)
    b = u * u * u + 1.0
    ra = jnp.maximum(a, 0.0)          # no zeros_like materialization
    rb = jnp.maximum(b, 0.0)
    out_ref[...] = (ra * ra + rb * rb).astype(out_ref.dtype)


def loss1(pred, true=None):
    """Elementwise Loss1; returns an array of the same shape as `pred`.

    `true` is accepted to mirror the PyTorch signature but is unused
    (exactly like the reference module) and is NOT moved through the kernel.
    """
    orig_shape = pred.shape
    dtype = pred.dtype
    x = pred.reshape(-1)
    n = x.size

    itemsize = jnp.dtype(dtype).itemsize
    # Native sublane packing multiple for this dtype (8 for 4B, 16 for 2B, 32 for 1B).
    sub = max(8, 32 // max(itemsize, 1))

    # Row-tile size: ~2 MiB tiles, sublane-multiple rows, capped so tiny
    # inputs don't over-pad.
    tb_target = max(sub, (_TARGET_TILE_BYTES // (_LANE * itemsize)) // sub * sub)
    rows_needed = pl.cdiv(n, _LANE)
    tb = int(min(tb_target, pl.cdiv(rows_needed, sub) * sub))
    rows = int(pl.cdiv(rows_needed, tb) * tb)           # rows % tb == 0
    padded = rows * _LANE

    if padded != n:
        x = jnp.pad(x, (0, padded - n))
    x2 = x.reshape(rows, _LANE)

    grid = (rows // tb,)
    out2 = pl.pallas_call(
        _loss1_kernel,
        out_shape=jax.ShapeDtypeStruct((rows, _LANE), dtype),
        grid=grid,
        in_specs=[pl.BlockSpec((tb, _LANE), lambda i: (i, 0))],
        out_specs=pl.BlockSpec((tb, _LANE), lambda i: (i, 0)),
        compiler_params=pltpu.CompilerParams(
            dimension_semantics=("parallel",)
        ),
    )(x2)

    if padded != n:
        return out2.reshape(-1)[:n].reshape(orig_shape)
    return out2.reshape(orig_shape)


def loss1_ref(pred, true=None):
    # Pure-JAX reference for correctness checking.
    a = (3.0 * pred - 2.3) ** 3 + 1.0
    b = (-3.0 * pred + 0.7) ** 3 + 1.0
    return jnp.maximum(0.0, a) ** 2 + jnp.maximum(0.0, b) ** 2


if __name__ == "__main__":
    key = jax.random.PRNGKey(0)
    k1, k2 = jax.random.split(key)
    # Small, tile-friendly shape: batch=8 "points", 128 features per point.
    pred = jax.random.uniform(k1, (8, 128), dtype=jnp.float32)
    true = jax.random.uniform(k2, (8, 128), dtype=jnp.float32)  # unused by the loss

    out = loss1(pred, true)
    out = jax.block_until_ready(out)

    expected = loss1_ref(pred, true)
    assert out.shape == expected.shape
    assert jnp.allclose(out, expected, atol=1e-5, rtol=1e-5), "mismatch vs reference"

    print("KERNEL_OK")
</pallas_src>

<mosaic_0001>
module attributes {stable_mosaic.version = 11 : i64} {
  func.func @_loss1_kernel(%arg0: i32, %arg1: memref<8x512xf32, #tpu.memory_space<vmem>>, %arg2: memref<8x512xf32, #tpu.memory_space<vmem>>) attributes {dimension_semantics = [#tpu.dimension_semantics<parallel>], iteration_bounds = array<i64: 1>, scalar_prefetch = 0 : i64, scratch_operands = 0 : i64, tpu.core_type = #tpu.core_type<tc>, window_params = [{transform_indices = @transform_0, window_bounds = array<i64: 8, 512>}, {transform_indices = @transform_1, window_bounds = array<i64: 8, 512>}]} {
    %c0 = arith.constant 0 : index
    %c0_0 = arith.constant 0 : index
    %0 = vector.load %arg1[%c0, %c0_0] : memref<8x512xf32, #tpu.memory_space<vmem>>, vector<8x512xf32>
    %cst = arith.constant 3.000000e+00 : f32
    %1 = vector.broadcast %cst : f32 to vector<8x512xf32>
    %2 = arith.mulf %1, %0 : vector<8x512xf32>
    %cst_1 = arith.constant 2.300000e+00 : f32
    %3 = vector.broadcast %cst_1 : f32 to vector<8x512xf32>
    %4 = arith.subf %2, %3 : vector<8x512xf32>
    %cst_2 = arith.constant 0.699999988 : f32
    %5 = vector.broadcast %cst_2 : f32 to vector<8x512xf32>
    %6 = arith.subf %5, %2 : vector<8x512xf32>
    %7 = arith.mulf %4, %4 : vector<8x512xf32>
    %8 = arith.mulf %7, %4 : vector<8x512xf32>
    %cst_3 = arith.constant 1.000000e+00 : f32
    %9 = vector.broadcast %cst_3 : f32 to vector<8x512xf32>
    %10 = arith.addf %8, %9 : vector<8x512xf32>
    %11 = arith.mulf %6, %6 : vector<8x512xf32>
    %12 = arith.mulf %11, %6 : vector<8x512xf32>
    %cst_4 = arith.constant 1.000000e+00 : f32
    %13 = vector.broadcast %cst_4 : f32 to vector<8x512xf32>
    %14 = arith.addf %12, %13 : vector<8x512xf32>
    %cst_5 = arith.constant 0.000000e+00 : f32
    %15 = vector.broadcast %cst_5 : f32 to vector<8x512xf32>
    %16 = arith.maximumf %10, %15 : vector<8x512xf32>
    %cst_6 = arith.constant 0.000000e+00 : f32
    %17 = vector.broadcast %cst_6 : f32 to vector<8x512xf32>
    %18 = arith.maximumf %14, %17 : vector<8x512xf32>
    %19 = arith.mulf %16, %16 : vector<8x512xf32>
    %20 = arith.mulf %18, %18 : vector<8x512xf32>
    %21 = arith.addf %19, %20 : vector<8x512xf32>
    %c0_7 = arith.constant 0 : index
    %c0_8 = arith.constant 0 : index
    %22 = vector.load %arg2[%c0_7, %c0_8] : memref<8x512xf32, #tpu.memory_space<vmem>>, vector<8x512xf32>
    tpu.vector_store %arg2[%c0_7, %c0_8], %21 {strides = array<i32>} : memref<8x512xf32, #tpu.memory_space<vmem>>, vector<8x512xf32>,
    return
  }
  func.func @transform_0(%arg0: i32) -> (i32, i32) {
    %c0_i32 = arith.constant 0 : i32
    %c0_i32_0 = arith.constant 0 : i32
    return %arg0, %c0_i32 : i32, i32
  }
  func.func @transform_1(%arg0: i32) -> (i32, i32) {
    %c0_i32 = arith.constant 0 : i32
    %c0_i32_0 = arith.constant 0 : i32
    return %arg0, %c0_i32 : i32, i32
  }
}

</mosaic_0001>

<llo_original>
// kernel: tpu_custom_call.1
$region0: #{tpu_custom_call.1}
  #allocation0 [shape = 'u32[]', space=smem, size = 0x4, offset = 0x4, fixed_abs, tag = 'smem constant byte address 0x4 - core index']
  #allocation1 [shape = 'u32[144,128]{1,0:T(1,128)}', space=vmem, size = 0x12000, scoped, tag = 'internal scratch']
  %s0 = inlined_call_operand.hbm [shape: f32[8,512], index: 0, kind: input, shape index: {}]
  %s1 = inlined_call_operand.hbm [shape: f32[8,512], index: 1, kind: output, shape index: {}]
  %s2 = sld [smem:[#allocation0]]
  $region18: #{tpu_custom_call.1} parent=0
    _
  %s4 = ssub.s32 1, %s2
  %s5 = scalar_select 0, %s4, %s2
  $region1: #{tpu_custom_call.1} parent=0
    #allocation2 [shape = 'u8[16384]{0}', space=vmem, size = 0x4000, scoped, tag = 'input window, operand 0, single buffered']
    #allocation3 [shape = 's32[1]{0}', space=sflag, size = 0x4, scoped, tag = 'scoped memory for tpu_custom_call.1']
    #allocation4 [shape = 's32[1]{0}', space=sflag, size = 0x4, scoped, tag = 'scoped memory for tpu_custom_call.1']
    #allocation5 [shape = 'u8[16384]{0}', space=vmem, size = 0x4000, scoped, tag = 'output window, operand 0, single buffered']
    %6 = vsyncpa [#allocation3], 0
    %7 = vsyncpa [#allocation4], 0
    // Predicated region
    $region2: #{tpu_custom_call.1} parent=1 // pred_check
      _
    $region3: #{tpu_custom_call.1} parent=1 // pred_check_branch
      %9 = sbr.rel (0) target = $region5
    $region4: #{tpu_custom_call.1} parent=1 // pred_region
      %s11 = ssub.s32 512, 512
      %12 = vsyncadd [#allocation3], %s11
      %s14 = sshll.u32 [#allocation2], 4
      %s15 = int_to_ptr.vmem [resolvable:$true] %s14
      %17 = dma.hbm_to_vmem [thread:$0]  %s0, 512, %s15, [#allocation3]
    $region5: #{tpu_custom_call.1} parent=1 // pred_fallthru
      _
    // Predicated region
    $region6: #{tpu_custom_call.1} parent=1 // pred_check
      _
    $region7: #{tpu_custom_call.1} parent=1 // pred_check_branch
      %19 = sbr.rel (0) target = $region9
    $region8: #{tpu_custom_call.1} parent=1 // pred_region
      %20 = dma.done [#allocation3], 512
    $region9: #{tpu_custom_call.1} parent=1 // pred_fallthru
      _
    %v21 = vld [vmem:[#allocation2] sm:$0xff]
    %v22 = vld [vmem:[#allocation2 + $0x8] sm:$0xff]
    %v23 = vld [vmem:[#allocation2 + $0x10] sm:$0xff]
    %v24 = vld [vmem:[#allocation2 + $0x18] sm:$0xff]
    %v25 = vmul.f32 %v21, 3.0
    %v26 = vmul.f32 %v22, 3.0
    %v27 = vmul.f32 %v23, 3.0
    %v28 = vmul.f32 %v24, 3.0
    %v29 = vsub.f32 %v25, 2.3
    %v30 = vsub.f32 %v26, 2.3
    %v31 = vsub.f32 %v27, 2.3
    %v32 = vsub.f32 %v28, 2.3
    %v33 = vsub.f32 0.7, %v25
    %v34 = vsub.f32 0.7, %v26
    %v35 = vsub.f32 0.7, %v27
    %v36 = vsub.f32 0.7, %v28
    %v37 = vmul.f32 %v29, %v29
    %v38 = vmul.f32 %v30, %v30
    %v39 = vmul.f32 %v31, %v31
    %v40 = vmul.f32 %v32, %v32
    %v41 = vmul.f32 %v37, %v29
    %v42 = vmul.f32 %v38, %v30
    %v43 = vmul.f32 %v39, %v31
    %v44 = vmul.f32 %v40, %v32
    %v45 = vadd.f32 %v41, 1.0
    %v46 = vadd.f32 %v42, 1.0
    %v47 = vadd.f32 %v43, 1.0
    %v48 = vadd.f32 %v44, 1.0
    %v49 = vmul.f32 %v33, %v33
    %v50 = vmul.f32 %v34, %v34
    %v51 = vmul.f32 %v35, %v35
    %v52 = vmul.f32 %v36, %v36
    %v53 = vmul.f32 %v49, %v33
    %v54 = vmul.f32 %v50, %v34
    %v55 = vmul.f32 %v51, %v35
    %v56 = vmul.f32 %v52, %v36
    %v57 = vadd.f32 %v53, 1.0
    %v58 = vadd.f32 %v54, 1.0
    %v59 = vadd.f32 %v55, 1.0
    %v60 = vadd.f32 %v56, 1.0
    %v61 = vmax.f32 %v45, 0.0
    %v62 = vmax.f32 %v46, 0.0
    %v63 = vmax.f32 %v47, 0.0
    %v64 = vmax.f32 %v48, 0.0
    %v65 = vmax.f32 %v57, 0.0
    %v66 = vmax.f32 %v58, 0.0
    %v67 = vmax.f32 %v59, 0.0
    %v68 = vmax.f32 %v60, 0.0
    %v69 = vmul.f32 %v61, %v61
    %v70 = vmul.f32 %v62, %v62
    %v71 = vmul.f32 %v63, %v63
    %v72 = vmul.f32 %v64, %v64
    %v73 = vmul.f32 %v65, %v65
    %v74 = vmul.f32 %v66, %v66
    %v75 = vmul.f32 %v67, %v67
    %v76 = vmul.f32 %v68, %v68
    %v77 = vadd.f32 %v69, %v73
    %v78 = vadd.f32 %v70, %v74
    %v79 = vadd.f32 %v71, %v75
    %v80 = vadd.f32 %v72, %v76
    %81 = vst [vmem:[#allocation5] sm:$0xff] %v77
    %82 = vst [vmem:[#allocation5 + $0x8] sm:$0xff] %v78
    %83 = vst [vmem:[#allocation5 + $0x10] sm:$0xff] %v79
    %84 = vst [vmem:[#allocation5 + $0x18] sm:$0xff] %v80
    // Predicated region
    $region10: #{tpu_custom_call.1} parent=1 // pred_check
      _
    $region11: #{tpu_custom_call.1} parent=1 // pred_check_branch
      %86 = sbr.rel (0) target = $region13
    $region12: #{tpu_custom_call.1} parent=1 // pred_region
      %s88 = ssub.s32 512, 512
      %89 = vsyncadd [#allocation4], %s88
      %s91 = sshll.u32 [#allocation5], 4
      %s92 = int_to_ptr.vmem [resolvable:$true] %s91
      %94 = dma.vmem_to_hbm [thread:$0]  %s92, 512, %s1, [#allocation4]
    $region13: #{tpu_custom_call.1} parent=1 // pred_fallthru
      _
    // Predicated region
    $region14: #{tpu_custom_call.1} parent=1 // pred_check
      _
    $region15: #{tpu_custom_call.1} parent=1 // pred_check_branch
      %96 = sbr.rel (0) target = $region17
    $region16: #{tpu_custom_call.1} parent=1 // pred_region
      %97 = dma.done [#allocation4], 512
    $region17: #{tpu_custom_call.1} parent=1 // pred_fallthru
      _
    %98 = vsyncpa [#allocation3], 1
    %99 = vsyncpa [#allocation4], 1

</llo_original>
